<compile_context>
chip_gen: v7x
topology: tpu7x:2x2x1
jax: 0.10.0
libtpu: 0.0.40
codegen_flags: <defaults>
</compile_context>

<pallas_src>
import functools

import jax
import jax.numpy as jnp
from jax import lax
from jax.experimental import pallas as pl
from jax.experimental.pallas import tpu as pltpu

LANE = 128


def _vmem_capacity_bytes():
    """Physical VMEM per core, with a conservative fallback (v7x per-TC)."""
    try:
        cap = int(pltpu.get_tpu_info().vmem_capacity_bytes)
        if cap >= 32 * 1024 * 1024:
            return cap
    except Exception:
        pass
    return 64 * 1024 * 1024


def _wce_kernel(logits_ref, tgt_ref, w_ref, out_ref, acc_ref, *,
                rows, tsub, chunks, first_masked_block, any_masked):
    """One (batch i, split s, row-chunk j) grid step of weighted cross-entropy.

    logits_ref: (1, C, TSUB, 128)  logits, native dtype (widened in-kernel)
    tgt_ref:    (1, TSUB, 128)     integer class indices (widened in-kernel)
    w_ref:      (1, TSUB, 128)     per-pixel weights
    out_ref:    (1, 1, 1)          partial sum of loss * weight for (i, s)
    acc_ref:    (TSUB, 128)        f32 elementwise running partial sums
    """
    s = pl.program_id(1)
    j = pl.program_id(2)

    @pl.when(j == 0)
    def _():
        acc_ref[...] = jnp.zeros_like(acc_ref)

    # Widen in-kernel; HBM streams stay in their native dtypes.
    x = logits_ref[0].astype(jnp.float32)        # (C, TSUB, 128)
    tgt = tgt_ref[0].astype(jnp.int32)           # (TSUB, 128)
    w = w_ref[0].astype(jnp.float32)             # (TSUB, 128)

    c = x.shape[0]

    # Numerically stable per-pixel log-sum-exp over the vreg-major class axis
    # (cross-vreg VPU max/add; exp/log on the EUP).
    m = jnp.max(x, axis=0)                                            # (TSUB, 128)
    lse = m + jnp.log(jnp.sum(jnp.exp(x - m[None, :, :]), axis=0))    # (TSUB, 128)

    # Logit at the target class via one-hot select (no dynamic gather).
    cls = lax.broadcasted_iota(jnp.int32, (c, tsub, LANE), 0)
    picked = jnp.sum(jnp.where(cls == tgt[None, :, :], x, 0.0), axis=0)

    contrib = (lse - picked) * w                                      # (TSUB, 128)

    if any_masked:
        # Only trailing blocks of the last split can reach rows >= `rows`
        # (ragged tail and/or clamped duplicate blocks).  Every other step is
        # a plain VPU add with no iota/compare/select.
        b = s * chunks + j

        @pl.when(b < first_masked_block)
        def _():
            acc_ref[...] += contrib

        @pl.when(b >= first_masked_block)
        def _():
            row = b * tsub + lax.broadcasted_iota(jnp.int32, (tsub, LANE), 0)
            # True select: data past `rows` is undefined (possibly NaN/Inf)
            # and must be discarded, never multiplied by a 0 mask.
            acc_ref[...] += jnp.where(row < rows, contrib, 0.0)
    else:
        acc_ref[...] += contrib

    @pl.when(j == chunks - 1)
    def _():
        out_ref[...] = jnp.full((1, 1, 1), jnp.sum(acc_ref[...]),
                                dtype=jnp.float32)


@functools.partial(jax.jit, static_argnames=("max_rows_per_block",))
def cross_entropy_loss_weighted(output, target, weight, *,
                                max_rows_per_block=None):
    """mean( CrossEntropy(output, target, reduction='none') * weight ) -> scalar."""
    n, c = output.shape[0], output.shape[1]
    spatial = output.shape[2:]
    assert target.shape == (n,) + spatial
    assert weight.shape == (n,) + spatial

    hw = 1
    for d in spatial:
        hw *= d
    total = n * hw

    # Flatten spatial dims: contiguous-dim merge, no HBM copy.
    logits = output.reshape(n, c, hw)
    tgt = target.reshape(n, hw)
    if not jnp.issubdtype(tgt.dtype, jnp.integer):
        tgt = tgt.astype(jnp.int32)
    w = weight.reshape(n, hw)

    # Lane-pad the pixel axis only when ragged: zero logits stay finite and
    # zero weights make the padded lanes contribute exactly 0.
    hw_pad = pl.cdiv(hw, LANE) * LANE
    if hw_pad != hw:
        pad = hw_pad - hw
        logits = jnp.pad(logits, ((0, 0), (0, 0), (0, pad)))
        tgt = jnp.pad(tgt, ((0, 0), (0, pad)))
        w = jnp.pad(w, ((0, 0), (0, pad)))
    rows = hw_pad // LANE

    # Dense (sublane, lane) pixel layout: contiguous splits, no data movement.
    logits = logits.reshape(n, c, rows, LANE)
    tgt = tgt.reshape(n, rows, LANE)
    w = w.reshape(n, rows, LANE)

    itemsize = jnp.dtype(logits.dtype).itemsize
    tgt_item = jnp.dtype(tgt.dtype).itemsize
    w_item = jnp.dtype(w.dtype).itemsize

    # Logits-block budget: ~8 MiB/step on 128 MiB-VMEM parts (v5e/v6e),
    # ~4 MiB on 64 MiB parts (v7x).  Amortizes the ~0.35 us per-step overhead
    # while leaving room for double-buffered inputs + in-kernel f32 temps.
    vmem_cap = _vmem_capacity_bytes()
    block_budget = (vmem_cap * 2 // 5) // 6
    target_block_bytes = max(2 * 1024 * 1024, min(8 * 1024 * 1024, block_budget))

    cap_rows = max(8, (target_block_bytes // (c * LANE * itemsize)) // 8 * 8)
    if max_rows_per_block is not None:          # test / tuning hook
        cap_rows = max(8, min(cap_rows, (max_rows_per_block // 8) * 8))
    tsub = rows if rows <= cap_rows else cap_rows
    num_p = pl.cdiv(rows, tsub)

    # v7x dual-TC occupancy: when the batch alone cannot fill both cores,
    # split the row-chunk range into two "parallel" halves.  Neutral on
    # single-TC v5e/v6e.
    nsplit = 2 if (n == 1 and num_p >= 2) else 1
    chunks = pl.cdiv(num_p, nsplit)

    # Blocks whose rows reach past `rows` (ragged tail + clamped duplicates of
    # the last split) need in-kernel masking; everything earlier is unmasked.
    first_masked_block = (rows // tsub) if rows % tsub else num_p
    any_masked = nsplit * chunks > first_masked_block

    def block_idx(s, j):
        # Clamp virtual block index so the DMA never walks past the array;
        # the clamped duplicates are fully masked inside the kernel.
        return jnp.minimum(s * chunks + j, num_p - 1)

    kernel = functools.partial(
        _wce_kernel,
        rows=rows,
        tsub=tsub,
        chunks=chunks,
        first_masked_block=first_masked_block,
        any_masked=any_masked,
    )

    # Explicit VMEM budget: double-buffered inputs + accumulator + headroom
    # for ~3 full-block f32 temporaries of the elementwise chain.
    blk_logits = c * tsub * LANE * itemsize
    blk_sides = tsub * LANE * (tgt_item + w_item)
    footprint = 2 * blk_logits + 2 * blk_sides + tsub * LANE * 4
    temps = 3 * c * tsub * LANE * 4
    vmem_limit = int(max(16 * 1024 * 1024,
                         min(vmem_cap - 8 * 1024 * 1024,
                             footprint + temps + 8 * 1024 * 1024)))

    cost = pl.CostEstimate(
        flops=6 * total * c,
        transcendentals=total * (c + 1),
        bytes_accessed=(logits.size * itemsize
                        + tgt.size * tgt_item
                        + w.size * w_item
                        + n * nsplit * 4),
    )

    partials = pl.pallas_call(
        kernel,
        out_shape=jax.ShapeDtypeStruct((n, nsplit, 1), jnp.float32),
        grid_spec=pltpu.PrefetchScalarGridSpec(
            num_scalar_prefetch=0,
            grid=(n, nsplit, chunks),
            in_specs=[
                pl.BlockSpec((1, c, tsub, LANE),
                             lambda i, s, j: (i, 0, block_idx(s, j), 0)),
                pl.BlockSpec((1, tsub, LANE),
                             lambda i, s, j: (i, block_idx(s, j), 0)),
                pl.BlockSpec((1, tsub, LANE),
                             lambda i, s, j: (i, block_idx(s, j), 0)),
            ],
            out_specs=pl.BlockSpec((1, 1, 1), lambda i, s, j: (i, s, 0)),
            scratch_shapes=[pltpu.VMEM((tsub, LANE), jnp.float32)],
        ),
        compiler_params=pltpu.CompilerParams(
            dimension_semantics=("parallel", "parallel", "arbitrary"),
            vmem_limit_bytes=vmem_limit,
        ),
        cost_estimate=cost,
    )(logits, tgt, w)

    # Partials are per-(batch, split) sums of (loss * weight); torch.mean
    # divides by the total element count of the (N, *spatial) loss tensor.
    return jnp.sum(partials) / total


def _reference(output, target, weight):
    log_probs = jax.nn.log_softmax(output, axis=1)
    picked = jnp.take_along_axis(log_probs, target[:, None], axis=1)[:, 0]
    return jnp.mean((-picked) * weight)


if __name__ == "__main__":
    key = jax.random.PRNGKey(0)
    k1, k2, k3, k4, k5, k6 = jax.random.split(key, 6)

    # Case 1: small NCHW logits + integer targets + per-pixel weights
    # (128-aligned pixel count, N >= 2 -> simple unmasked single-chunk path).
    N, C, H, W = 2, 4, 16, 16
    output = jax.random.normal(k1, (N, C, H, W), dtype=jnp.float32)
    target = jax.random.randint(k2, (N, H, W), 0, C, dtype=jnp.int32)
    weight = jax.random.uniform(k3, (N, H, W), dtype=jnp.float32)

    loss = jax.block_until_ready(cross_entropy_loss_weighted(output, target, weight))
    ref = _reference(output, target, weight)
    assert jnp.allclose(loss, ref, rtol=1e-4, atol=1e-6), (loss, ref)

    # Case 2: ragged pixel count, N == 1, forced small row-blocks -> exercises
    # lane padding, the dual-TC split axis, clamped blocks and tail masking.
    N2, C2, H2, W2 = 1, 3, 36, 65
    output2 = jax.random.normal(k4, (N2, C2, H2, W2), dtype=jnp.float32)
    target2 = jax.random.randint(k5, (N2, H2, W2), 0, C2, dtype=jnp.int32)
    weight2 = jax.random.uniform(k6, (N2, H2, W2), dtype=jnp.float32)

    loss2 = jax.block_until_ready(
        cross_entropy_loss_weighted(output2, target2, weight2,
                                    max_rows_per_block=8))
    ref2 = _reference(output2, target2, weight2)
    assert jnp.allclose(loss2, ref2, rtol=1e-4, atol=1e-6), (loss2, ref2)

    print("KERNEL_OK")
</pallas_src>

<mosaic_0001>
module attributes {stable_mosaic.version = 11 : i64} {
  func.func @_wce_kernel(%arg0: i32, %arg1: i32, %arg2: i32, %arg3: memref<1x4x2x128xf32, #tpu.memory_space<vmem>>, %arg4: memref<1x2x128xi32, #tpu.memory_space<vmem>>, %arg5: memref<1x2x128xf32, #tpu.memory_space<vmem>>, %arg6: memref<1x1x1xf32, #tpu.memory_space<vmem>>, %arg7: memref<2x128xf32, #tpu.memory_space<vmem>>) attributes {dimension_semantics = [#tpu.dimension_semantics<parallel>, #tpu.dimension_semantics<parallel>, #tpu.dimension_semantics<arbitrary>], iteration_bounds = array<i64: 2, 1, 1>, scalar_prefetch = 0 : i64, scratch_operands = 1 : i64, tpu.core_type = #tpu.core_type<tc>, window_params = [{transform_indices = @transform_0, window_bounds = array<i64: 1, 4, 2, 128>}, {transform_indices = @transform_1, window_bounds = array<i64: 1, 2, 128>}, {transform_indices = @transform_2, window_bounds = array<i64: 1, 2, 128>}, {transform_indices = @transform_3, window_bounds = array<i64: 1, 1, 1>}]} {
    %c0_i32 = arith.constant 0 : i32
    %0 = arith.cmpi eq, %arg2, %c0_i32 : i32
    %1 = arith.extui %0 : i1 to i32
    %c0_i32_0 = arith.constant 0 : i32
    %2 = arith.cmpi ne, %1, %c0_i32_0 : i32
    scf.if %2 {
      %cst_19 = arith.constant 0.000000e+00 : f32
      %32 = vector.broadcast %cst_19 : f32 to vector<2x128xf32>
      %c0_20 = arith.constant 0 : index
      %c0_21 = arith.constant 0 : index
      %33 = vector.load %arg7[%c0_20, %c0_21] : memref<2x128xf32, #tpu.memory_space<vmem>>, vector<2x128xf32>
      tpu.vector_store %arg7[%c0_20, %c0_21], %32 {strides = array<i32>} : memref<2x128xf32, #tpu.memory_space<vmem>>, vector<2x128xf32>,
    } else {
    }
    %c0 = arith.constant 0 : index
    %c0_1 = arith.constant 0 : index
    %c0_2 = arith.constant 0 : index
    %c0_3 = arith.constant 0 : index
    %3 = vector.load %arg3[%c0, %c0_1, %c0_2, %c0_3] : memref<1x4x2x128xf32, #tpu.memory_space<vmem>>, vector<1x4x2x128xf32>
    %4 = vector.shape_cast %3 : vector<1x4x2x128xf32> to vector<4x2x128xf32>
    %c0_4 = arith.constant 0 : index
    %c0_5 = arith.constant 0 : index
    %c0_6 = arith.constant 0 : index
    %5 = vector.load %arg4[%c0_4, %c0_5, %c0_6] : memref<1x2x128xi32, #tpu.memory_space<vmem>>, vector<1x2x128xi32>
    %6 = vector.shape_cast %5 : vector<1x2x128xi32> to vector<2x128xi32>
    %c0_7 = arith.constant 0 : index
    %c0_8 = arith.constant 0 : index
    %c0_9 = arith.constant 0 : index
    %7 = vector.load %arg5[%c0_7, %c0_8, %c0_9] : memref<1x2x128xf32, #tpu.memory_space<vmem>>, vector<1x2x128xf32>
    %8 = vector.shape_cast %7 : vector<1x2x128xf32> to vector<2x128xf32>
    %cst = arith.constant dense<0xFF800000> : vector<2x128xf32>
    %9 = vector.multi_reduction <maximumf>, %4, %cst [0] : vector<4x2x128xf32> to vector<2x128xf32>
    %10 = vector.shape_cast %9 : vector<2x128xf32> to vector<1x2x128xf32>
    %11 = vector.broadcast %10 : vector<1x2x128xf32> to vector<4x2x128xf32>
    %12 = arith.subf %4, %11 : vector<4x2x128xf32>
    %13 = math.exp %12 : vector<4x2x128xf32>
    %cst_10 = arith.constant dense<0.000000e+00> : vector<2x128xf32>
    %14 = vector.multi_reduction <add>, %13, %cst_10 [0] : vector<4x2x128xf32> to vector<2x128xf32>
    %15 = math.log %14 : vector<2x128xf32>
    %16 = arith.addf %9, %15 : vector<2x128xf32>
    %17 = tpu.iota {dimensions = array<i32: 0>} : vector<4x2x128xi32>
    %18 = vector.shape_cast %6 : vector<2x128xi32> to vector<1x2x128xi32>
    %19 = vector.broadcast %18 : vector<1x2x128xi32> to vector<4x2x128xi32>
    %20 = arith.cmpi eq, %17, %19 : vector<4x2x128xi32>
    %cst_11 = arith.constant 0.000000e+00 : f32
    %21 = vector.broadcast %cst_11 : f32 to vector<4x2x128xf32>
    %22 = arith.select %20, %4, %21 : vector<4x2x128xi1>, vector<4x2x128xf32>
    %cst_12 = arith.constant dense<0.000000e+00> : vector<2x128xf32>
    %23 = vector.multi_reduction <add>, %22, %cst_12 [0] : vector<4x2x128xf32> to vector<2x128xf32>
    %24 = arith.subf %16, %23 : vector<2x128xf32>
    %25 = arith.mulf %24, %8 : vector<2x128xf32>
    %c0_13 = arith.constant 0 : index
    %c0_14 = arith.constant 0 : index
    %26 = vector.load %arg7[%c0_13, %c0_14] : memref<2x128xf32, #tpu.memory_space<vmem>>, vector<2x128xf32>
    %27 = arith.addf %26, %25 : vector<2x128xf32>
    %c0_15 = arith.constant 0 : index
    %c0_16 = arith.constant 0 : index
    %28 = vector.load %arg7[%c0_15, %c0_16] : memref<2x128xf32, #tpu.memory_space<vmem>>, vector<2x128xf32>
    tpu.vector_store %arg7[%c0_15, %c0_16], %27 {strides = array<i32>} : memref<2x128xf32, #tpu.memory_space<vmem>>, vector<2x128xf32>,
    %c0_i32_17 = arith.constant 0 : i32
    %29 = arith.cmpi eq, %arg2, %c0_i32_17 : i32
    %30 = arith.extui %29 : i1 to i32
    %c0_i32_18 = arith.constant 0 : i32
    %31 = arith.cmpi ne, %30, %c0_i32_18 : i32
    scf.if %31 {
      %c0_19 = arith.constant 0 : index
      %c0_20 = arith.constant 0 : index
      %32 = vector.load %arg7[%c0_19, %c0_20] : memref<2x128xf32, #tpu.memory_space<vmem>>, vector<2x128xf32>
      %33 = vector.shape_cast %32 : vector<2x128xf32> to vector<1x2x128xf32>
      %cst_21 = arith.constant dense<0.000000e+00> : vector<1xf32>
      %34 = vector.multi_reduction <add>, %33, %cst_21 [1, 2] : vector<1x2x128xf32> to vector<1xf32>
      %35 = vector.shape_cast %34 : vector<1xf32> to vector<1x1x1xf32>
      %36 = vector.extract %35[0, 0, 0] : f32 from vector<1x1x1xf32>
      %37 = vector.broadcast %36 : f32 to vector<1x1x1xf32>
      %c0_22 = arith.constant 0 : index
      %c0_23 = arith.constant 0 : index
      %c0_24 = arith.constant 0 : index
      %38 = vector.load %arg6[%c0_22, %c0_23, %c0_24] : memref<1x1x1xf32, #tpu.memory_space<vmem>>, vector<1x1x1xf32>
      tpu.vector_store %arg6[%c0_22, %c0_23, %c0_24], %37 {strides = array<i32>} : memref<1x1x1xf32, #tpu.memory_space<vmem>>, vector<1x1x1xf32>,
    } else {
    }
    return
  }
  func.func @transform_0(%arg0: i32, %arg1: i32, %arg2: i32) -> (i32, i32, i32, i32) {
    %c1_i32 = arith.constant 1 : i32
    %0 = arith.muli %arg1, %c1_i32 : i32
    %1 = arith.addi %0, %arg2 : i32
    %c0_i32 = arith.constant 0 : i32
    %2 = arith.minsi %1, %c0_i32 : i32
    %c0_i32_0 = arith.constant 0 : i32
    %c0_i32_1 = arith.constant 0 : i32
    %c0_i32_2 = arith.constant 0 : i32
    return %arg0, %c0_i32_0, %2, %c0_i32_1 : i32, i32, i32, i32
  }
  func.func @transform_1(%arg0: i32, %arg1: i32, %arg2: i32) -> (i32, i32, i32) {
    %c1_i32 = arith.constant 1 : i32
    %0 = arith.muli %arg1, %c1_i32 : i32
    %1 = arith.addi %0, %arg2 : i32
    %c0_i32 = arith.constant 0 : i32
    %2 = arith.minsi %1, %c0_i32 : i32
    %c0_i32_0 = arith.constant 0 : i32
    %c0_i32_1 = arith.constant 0 : i32
    return %arg0, %2, %c0_i32_0 : i32, i32, i32
  }
  func.func @transform_2(%arg0: i32, %arg1: i32, %arg2: i32) -> (i32, i32, i32) {
    %c1_i32 = arith.constant 1 : i32
    %0 = arith.muli %arg1, %c1_i32 : i32
    %1 = arith.addi %0, %arg2 : i32
    %c0_i32 = arith.constant 0 : i32
    %2 = arith.minsi %1, %c0_i32 : i32
    %c0_i32_0 = arith.constant 0 : i32
    %c0_i32_1 = arith.constant 0 : i32
    return %arg0, %2, %c0_i32_0 : i32, i32, i32
  }
  func.func @transform_3(%arg0: i32, %arg1: i32, %arg2: i32) -> (i32, i32, i32) {
    %c0_i32 = arith.constant 0 : i32
    %c0_i32_0 = arith.constant 0 : i32
    return %arg0, %arg1, %c0_i32 : i32, i32, i32
  }
}

</mosaic_0001>

<llo_original>
// kernel: cross_entropy_loss_weighted.1
$region0: #{cross_entropy_loss_weighted.1}
  #allocation0 [shape = 'u32[]', space=smem, size = 0x4, offset = 0x4, fixed_abs, tag = 'smem constant byte address 0x4 - core index']
  #allocation1 [shape = 'u32[144,128]{1,0:T(1,128)}', space=vmem, size = 0x12000, scoped, tag = 'internal scratch']
  #allocation2 [shape = 'f32[2,128]{1,0:T(2,128)}', space=vmem, size = 0x400, scoped, tag = 'scratch operand']
  %s0 = inlined_call_operand.vmem [shape: f32[2,4,2,128], index: 0, kind: input, shape index: {}]
  %s1 = inlined_call_operand.vmem [shape: s32[2,2,128], index: 1, kind: input, shape index: {}]
  %s2 = inlined_call_operand.vmem [shape: f32[2,2,128], index: 2, kind: input, shape index: {}]
  %s3 = inlined_call_operand.vmem [shape: f32[2,1,1], index: 3, kind: output, shape index: {}]
  %s4 = sld [smem:[#allocation0]]
  $region53: #{cross_entropy_loss_weighted.1} parent=0
    _
  %s6 = ssub.s32 1, %s4
  %s7 = scalar_select 0, %s6, %s4
  loop: start=0, step=1, limit=4
  $region2: #{cross_entropy_loss_weighted.1} parent=0 // loop_pre_header
    _
  $region3: #{cross_entropy_loss_weighted.1} parent=0 // loop_header
    %s9 = sphi 0, %s13
    %p10 = scmp.ge.s32.totalorder %s9, 4
    %s16 = sphi 0, %s35
    %s17 = sphi 0, %s31
    %s18 = sphi 0, %s27
    %s19 = sphi 0, %s16
    %s20 = sphi 0, %s17
    %s21 = sphi 0, %s18
    %s22 = sphi 0, %s19
    %s23 = sphi 0, %s20
    %s24 = sphi 0, %s21
    %s46 = sphi 0, %s48
    %s49 = sphi 0, %s46
    %s50 = sphi 0, %s49
    %s66 = sphi 0, %s50
    %s80 = sphi 0, %s82
    %s83 = sphi 0, %s80
    %s84 = sphi 0, %s83
    %s100 = sphi 0, %s84
    %s114 = sphi 0, %s116
    %s117 = sphi 0, %s114
    %s118 = sphi 0, %s117
    %s134 = sphi 0, %s118
    %s142 = sphi 0, %s144
    %s145 = sphi 0, %s142
    %s146 = sphi 0, %s145
    %s162 = sphi 0, %s146
  $region4: #{cross_entropy_loss_weighted.1} parent=0 // loop_header_branch
    %12 = sbr.rel (%p10) target = $region8
  $region5: #{cross_entropy_loss_weighted.1} parent=0 // loop_body
    %s14 = ssub.s32 %s9, 1
    %s15 = ssub.s32 %s9, 2
    %s25 = sadd.s32 1, %s18
    %p26 = scmp.ge.s32.totalorder %s25, 1
    %s27 = scalar_select %p26, 0, %s25
    %s28 = sadd.s32 1, %s17
    %s29 = scalar_select %p26, %s28, %s17
    %p30 = scmp.ge.s32.totalorder %s29, 1
    %s31 = scalar_select %p30, 0, %s29
    %s32 = sadd.s32 1, %s16
    %s33 = scalar_select %p30, %s32, %s16
    %p34 = scmp.ge.s32.totalorder %s33, 2
    %s35 = scalar_select %p34, 0, %s33
    %s36 = sadd.s32 %s17, %s18
    %p37 = scmp.lt.s32.totalorder %s36, 0
    %s38 = scalar_select %p37, %s36, 0
    %s39 = sadd.s32 %s31, %s27
    %p40 = scmp.lt.s32.totalorder %s39, 0
    %s41 = scalar_select %p40, %s39, 0
    %s42 = ssub.s32 %s16, %s35
    %s43 = ssub.s32 %s38, %s41
    %s44 = sor.u32 %s42, %s43
    %p45 = scmp.eq.s32.totalorder %s44, 0
    %s47 = sadd.s32 %s46, 1
    %s48 = scalar_select %p45, %s46, %s47
    %p51 = pneg %p45
    %p52 = scmp.eq.s32.totalorder %s9, 1
    %p53 = por %p51, %p52
    %p54 = scmp.ne.s32.totalorder %s46, %s49
    %p55 = scmp.eq.s32.totalorder %s9, 0
    %p56 = por %p54, %p55
    %p57 = scmp.ne.s32.totalorder %s46, %s49
    %p58 = scmp.eq.s32.totalorder %s14, 1
    %p59 = por %p57, %p58
    %p60 = scmp.ne.s32.totalorder %s49, %s50
    %p61 = scmp.eq.s32.totalorder %s14, 0
    %p62 = por %p60, %p61
    %p63 = scmp.ne.s32.totalorder %s49, %s50
    %p64 = scmp.eq.s32.totalorder %s15, 1
    %p65 = por %p63, %p64
    %p67 = scmp.ne.s32.totalorder %s50, %s66
    %p68 = scmp.eq.s32.totalorder %s15, 0
    %p69 = por %p67, %p68
    %s70 = sadd.s32 %s17, %s18
    %p71 = scmp.lt.s32.totalorder %s70, 0
    %s72 = scalar_select %p71, %s70, 0
    %s73 = sadd.s32 %s31, %s27
    %p74 = scmp.lt.s32.totalorder %s73, 0
    %s75 = scalar_select %p74, %s73, 0
    %s76 = ssub.s32 %s16, %s35
    %s77 = ssub.s32 %s72, %s75
    %s78 = sor.u32 %s76, %s77
    %p79 = scmp.eq.s32.totalorder %s78, 0
    %s81 = sadd.s32 %s80, 1
    %s82 = scalar_select %p79, %s80, %s81
    %p85 = pneg %p79
    %p86 = scmp.eq.s32.totalorder %s9, 1
    %p87 = por %p85, %p86
    %p88 = scmp.ne.s32.totalorder %s80, %s83
    %p89 = scmp.eq.s32.totalorder %s9, 0
    %p90 = por %p88, %p89
    %p91 = scmp.ne.s32.totalorder %s80, %s83
    %p92 = scmp.eq.s32.totalorder %s14, 1
    %p93 = por %p91, %p92
    %p94 = scmp.ne.s32.totalorder %s83, %s84
    %p95 = scmp.eq.s32.totalorder %s14, 0
    %p96 = por %p94, %p95
    %p97 = scmp.ne.s32.totalorder %s83, %s84
    %p98 = scmp.eq.s32.totalorder %s15, 1
    %p99 = por %p97, %p98
    %p101 = scmp.ne.s32.totalorder %s84, %s100
    %p102 = scmp.eq.s32.totalorder %s15, 0
    %p103 = por %p101, %p102
    %s104 = sadd.s32 %s17, %s18
    %p105 = scmp.lt.s32.totalorder %s104, 0
    %s106 = scalar_select %p105, %s104, 0
    %s107 = sadd.s32 %s31, %s27
    %p108 = scmp.lt.s32.totalorder %s107, 0
    %s109 = scalar_select %p108, %s107, 0
    %s110 = ssub.s32 %s16, %s35
    %s111 = ssub.s32 %s106, %s109
    %s112 = sor.u32 %s110, %s111
    %p113 = scmp.eq.s32.totalorder %s112, 0
    %s115 = sadd.s32 %s114, 1
    %s116 = scalar_select %p113, %s114, %s115
    %p119 = pneg %p113
    %p120 = scmp.eq.s32.totalorder %s9, 1
    %p121 = por %p119, %p120
    %p122 = scmp.ne.s32.totalorder %s114, %s117
    %p123 = scmp.eq.s32.totalorder %s9, 0
    %p124 = por %p122, %p123
    %p125 = scmp.ne.s32.totalorder %s114, %s117
    %p126 = scmp.eq.s32.totalorder %s14, 1
    %p127 = por %p125, %p126
    %p128 = scmp.ne.s32.totalorder %s117, %s118
    %p129 = scmp.eq.s32.totalorder %s14, 0
    %p130 = por %p128, %p129
    %p131 = scmp.ne.s32.totalorder %s117, %s118
    %p132 = scmp.eq.s32.totalorder %s15, 1
    %p133 = por %p131, %p132
    %p135 = scmp.ne.s32.totalorder %s118, %s134
    %p136 = scmp.eq.s32.totalorder %s15, 0
    %p137 = por %p135, %p136
    %s138 = ssub.s32 %s16, %s35
    %s139 = ssub.s32 %s17, %s31
    %s140 = sor.u32 %s138, %s139
    %p141 = scmp.eq.s32.totalorder %s140, 0
    %s143 = sadd.s32 %s142, 1
    %s144 = scalar_select %p141, %s142, %s143
    %p147 = pneg %p141
    %p148 = scmp.eq.s32.totalorder %s9, 1
    %p149 = por %p147, %p148
    %p150 = scmp.ne.s32.totalorder %s142, %s145
    %p151 = scmp.eq.s32.totalorder %s9, 0
    %p152 = por %p150, %p151
    %p153 = scmp.ne.s32.totalorder %s142, %s145
    %p154 = scmp.eq.s32.totalorder %s14, 1
    %p155 = por %p153, %p154
    %p156 = scmp.ne.s32.totalorder %s145, %s146
    %p157 = scmp.eq.s32.totalorder %s14, 0
    %p158 = por %p156, %p157
    %p159 = scmp.ne.s32.totalorder %s145, %s146
    %p160 = scmp.eq.s32.totalorder %s15, 1
    %p161 = por %p159, %p160
    %p163 = scmp.ne.s32.totalorder %s146, %s162
    %p164 = scmp.eq.s32.totalorder %s15, 0
    %p165 = por %p163, %p164
    %p166 = scmp.le.s32.totalorder 1, %s9
    %p167 = scmp.lt.s32.totalorder %s9, 3
    %p168 = pnand %p166, %p167
    %p169 = pneg %p168
    // Predicated region
    $region9: #{cross_entropy_loss_weighted.1} parent=5 // pred_check
      _
    $region10: #{cross_entropy_loss_weighted.1} parent=5 // pred_check_branch
      %171 = sbr.rel (%p168) target = $region12
    $region11: #{cross_entropy_loss_weighted.1} parent=5 // pred_region
      %s172 = ssub.s32 %s9, 1
    $region12: #{cross_entropy_loss_weighted.1} parent=5 // pred_fallthru
      _
    %p173 = scmp.lt.s32.totalorder %s9, 2
    // Predicated region
    $region13: #{cross_entropy_loss_weighted.1} parent=5 // pred_check
      %p174 = pneg %p173
    $region14: #{cross_entropy_loss_weighted.1} parent=5 // pred_check_branch
      %176 = sbr.rel (%p174) target = $region16
    $region15: #{cross_entropy_loss_weighted.1} parent=5 // pred_region
      // Predicated region
      $region17: #{cross_entropy_loss_weighted.1} parent=15 // pred_check
        %p177 = pneg %p56
      $region18: #{cross_entropy_loss_weighted.1} parent=15 // pred_check_branch
        %179 = sbr.rel (%p177) target = $region20
      $region19: #{cross_entropy_loss_weighted.1} parent=15 // pred_region
        %s180 = sadd.s32 %s17, %s18
        %p181 = scmp.lt.s32.totalorder %s180, 0
        %s182 = scalar_select %p181, %s180, 0
        %p183 = scmp.lt.s32.totalorder %s16, 1
        %s184 = scalar_select %p183, %s16, 1
        %p185 = scmp.lt.s32.totalorder %s182, 0
        %s186 = scalar_select %p185, %s182, 0
        %s187 = smul.addr %s184, 4
        %s188 = sadd.s32 %s186, %s187
        %s189 = smul.addr %s188, 2
        %s190 = scalar_lea.vmem %s0, %s189
        %s191 = sadd.s32 %s17, %s18
        %p192 = scmp.lt.s32.totalorder %s191, 0
        %s193 = scalar_select %p192, %s191, 0
      $region20: #{cross_entropy_loss_weighted.1} parent=15 // pred_fallthru
        _
      // Predicated region
      $region21: #{cross_entropy_loss_weighted.1} parent=15 // pred_check
        %p194 = pneg %p90
      $region22: #{cross_entropy_loss_weighted.1} parent=15 // pred_check_branch
        %196 = sbr.rel (%p194) target = $region24
      $region23: #{cross_entropy_loss_weighted.1} parent=15 // pred_region
        %s197 = sadd.s32 %s17, %s18
        %p198 = scmp.lt.s32.totalorder %s197, 0
        %s199 = scalar_select %p198, %s197, 0
        %p200 = scmp.lt.s32.totalorder %s16, 1
        %s201 = scalar_select %p200, %s16, 1
        %p202 = scmp.lt.s32.totalorder %s199, 0
        %s203 = scalar_select %p202, %s199, 0
        %s204 = sadd.s32 %s203, %s201
        %s205 = smul.addr %s204, 2
        %s206 = scalar_lea.vmem %s1, %s205
        %s207 = sadd.s32 %s17, %s18
        %p208 = scmp.lt.s32.totalorder %s207, 0
        %s209 = scalar_select %p208, %s207, 0
      $region24: #{cross_entropy_loss_weighted.1} parent=15 // pred_fallthru
        _
      // Predicated region
      $region25: #{cross_entropy_loss_weighted.1} parent=15 // pred_check
        %p210 = pneg %p124
      $region26: #{cross_entropy_loss_weighted.1} parent=15 // pred_check_branch
        %212 = sbr.rel (%p210) target = $region28
      $region27: #{cross_entropy_loss_weighted.1} parent=15 // pred_region
        %s213 = sadd.s32 %s17, %s18
        %p214 = scmp.lt.s32.totalorder %s213, 0
        %s215 = scalar_select %p214, %s213, 0
        %p216 = scmp.lt.s32.totalorder %s16, 1
        %s217 = scalar_select %p216, %s16, 1
        %p218 = scmp.lt.s32.totalorder %s215, 0
        %s219 = scalar_select %p218, %s215, 0
        %s220 = sadd.s32 %s219, %s217
        %s221 = smul.addr %s220, 2
        %s222 = scalar_lea.vmem %s2, %s221
        %s223 = sadd.s32 %s17, %s18
        %p224 = scmp.lt.s32.totalorder %s223, 0
        %s225 = scalar_select %p224, %s223, 0
      $region28: #{cross_entropy_loss_weighted.1} parent=15 // pred_fallthru
        _
    $region16: #{cross_entropy_loss_weighted.1} parent=5 // pred_fallthru
      _
    %p226 = scmp.le.s32.totalorder 1, %s9
    %p227 = scmp.lt.s32.totalorder %s9, 3
    %p228 = pnand %p226, %p227
    %p229 = pneg %p228
    // Predicated region
    $region29: #{cross_entropy_loss_weighted.1} parent=5 // pred_check
      _
    $region30: #{cross_entropy_loss_weighted.1} parent=5 // pred_check_branch
      %231 = sbr.rel (%p228) target = $region32
    $region31: #{cross_entropy_loss_weighted.1} parent=5 // pred_region
      %s232 = ssub.s32 %s9, 1
      %s233 = sadd.s32 %s20, %s21
      %p234 = scmp.lt.s32.totalorder %s233, 0
      %s235 = scalar_select %p234, %s233, 0
      %p236 = scmp.lt.s32.totalorder %s19, 1
      %s237 = scalar_select %p236, %s19, 1
      %p238 = scmp.lt.s32.totalorder %s235, 0
      %s239 = scalar_select %p238, %s235, 0
      %s240 = smul.addr %s237, 4
      %s241 = sadd.s32 %s239, %s240
      %s242 = smul.addr %s241, 2
      %s243 = scalar_lea.vmem %s0, %s242
      %p244 = pneg %p62
      %p245 = pneg %p59
      %s246 = sadd.s32 %s20, %s21
      %p247 = scmp.lt.s32.totalorder %s246, 0
      %s248 = scalar_select %p247, %s246, 0
      %p249 = scmp.lt.s32.totalorder %s19, 1
      %s250 = scalar_select %p249, %s19, 1
      %p251 = scmp.lt.s32.totalorder %s248, 0
      %s252 = scalar_select %p251, %s248, 0
      %s253 = sadd.s32 %s252, %s250
      %s254 = smul.addr %s253, 2
      %s255 = scalar_lea.vmem %s1, %s254
      %p256 = pneg %p96
      %p257 = pneg %p93
      %s258 = sadd.s32 %s20, %s21
      %p259 = scmp.lt.s32.totalorder %s258, 0
      %s260 = scalar_select %p259, %s258, 0
      %p261 = scmp.lt.s32.totalorder %s19, 1
      %s262 = scalar_select %p261, %s19, 1
      %p263 = scmp.lt.s32.totalorder %s260, 0
      %s264 = scalar_select %p263, %s260, 0
      %s265 = sadd.s32 %s264, %s262
      %s266 = smul.addr %s265, 2
      %s267 = scalar_lea.vmem %s2, %s266
      %p268 = pneg %p130
      %p269 = pneg %p127
      %p270 = pneg %p158
      %p271 = pneg %p155
      %p272 = scmp.lt.s32.totalorder %s19, 1
      %s273 = scalar_select %p272, %s19, 1
      %p274 = scmp.lt.s32.totalorder %s20, 0
      %s275 = scalar_select %p274, %s20, 0
      %s276 = sadd.s32 %s275, %s273
      %s277 = scalar_lea.vmem %s3, %s276
      %s278 = sadd.s32 %s20, %s21
      %p279 = scmp.lt.s32.totalorder %s278, 0
      %s280 = scalar_select %p279, %s278, 0
      %p281 = scmp.lt.s32.totalorder %s19, 1
      %s282 = scalar_select %p281, %s19, 1
      %p283 = scmp.lt.s32.totalorder %s280, 0
      %s284 = scalar_select %p283, %s280, 0
      %s285 = smul.addr %s282, 4
      %s286 = sadd.s32 %s284, %s285
      %s287 = smul.addr %s286, 2
      %s288 = scalar_lea.vmem %s0, %s287
      %s289 = sadd.s32 %s20, %s21
      %p290 = scmp.lt.s32.totalorder %s289, 0
      %s291 = scalar_select %p290, %s289, 0
      %s292 = sadd.s32 %s20, %s21
      %p293 = scmp.lt.s32.totalorder %s292, 0
      %s294 = scalar_select %p293, %s292, 0
      %p295 = scmp.lt.s32.totalorder %s19, 1
      %s296 = scalar_select %p295, %s19, 1
      %p297 = scmp.lt.s32.totalorder %s294, 0
      %s298 = scalar_select %p297, %s294, 0
      %s299 = sadd.s32 %s298, %s296
      %s300 = smul.addr %s299, 2
      %s301 = scalar_lea.vmem %s1, %s300
      %s302 = sadd.s32 %s20, %s21
      %p303 = scmp.lt.s32.totalorder %s302, 0
      %s304 = scalar_select %p303, %s302, 0
      %s305 = sadd.s32 %s20, %s21
      %p306 = scmp.lt.s32.totalorder %s305, 0
      %s307 = scalar_select %p306, %s305, 0
      %p308 = scmp.lt.s32.totalorder %s19, 1
      %s309 = scalar_select %p308, %s19, 1
      %p310 = scmp.lt.s32.totalorder %s307, 0
      %s311 = scalar_select %p310, %s307, 0
      %s312 = sadd.s32 %s311, %s309
      %s313 = smul.addr %s312, 2
      %s314 = scalar_lea.vmem %s2, %s313
      %s315 = sadd.s32 %s20, %s21
      %p316 = scmp.lt.s32.totalorder %s315, 0
      %s317 = scalar_select %p316, %s315, 0
      %p318 = scmp.lt.s32.totalorder %s19, 1
      %s319 = scalar_select %p318, %s19, 1
      %p320 = scmp.lt.s32.totalorder %s20, 0
      %s321 = scalar_select %p320, %s20, 0
      %s322 = sadd.s32 %s321, %s319
      %s323 = scalar_lea.vmem %s3, %s322
      %p324 = scmp.eq.s32.totalorder %s21, 0
      // Predicated region
      $region33: #{cross_entropy_loss_weighted.1} parent=31 // pred_check
        %p325 = pneg %p324
      $region34: #{cross_entropy_loss_weighted.1} parent=31 // pred_check_branch
        %327 = sbr.rel (%p325) target = $region36
      $region35: #{cross_entropy_loss_weighted.1} parent=31 // pred_region
        %328 = vst [vmem:[#allocation2] sm:$0x3] 0.0
      $region36: #{cross_entropy_loss_weighted.1} parent=31 // pred_fallthru
        _
      %v329 = vld [vmem:[%s288] sm:$0x3]
      %v330 = vld [vmem:[%s288 + $0x2] sm:$0x3]
      %v331 = vld [vmem:[%s288 + $0x4] sm:$0x3]
      %v332 = vld [vmem:[%s288 + $0x6] sm:$0x3]
      %v333 = vld [vmem:[%s301] sm:$0x3]
      %v334 = vld [vmem:[%s314] sm:$0x3]
      %vm335 = vcmask 1041408
      %v336 = vsel %vm335, %v329, -inf
      %v337 = vsel %vm335, %v330, -inf
      %v338 = vsel %vm335, %v331, -inf
      %v339 = vsel %vm335, %v332, -inf
      %v340 = vmax.f32 %v336, %v337
      %v341 = vmax.f32 %v338, %v339
      %v342 = vmax.f32 %v340, %v341
      %v343 = vsub.f32 %v329, %v342
      %v344 = vsub.f32 %v330, %v342
      %v345 = vsub.f32 %v331, %v342
      %v346 = vsub.f32 %v332, %v342
      %v347 = vmul.f32 %v343, 1.442695
      %v348 = vpow.pop %v347
      %v349 = vmul.f32 %v344, 1.442695
      %v350 = vpow.pop %v349
      %v351 = vmul.f32 %v345, 1.442695
      %v352 = vpow.pop %v351
      %v353 = vmul.f32 %v346, 1.442695
      %v354 = vpow.pop %v353
      %v355 = vsel %vm335, %v348, 0.0
      %v356 = vsel %vm335, %v350, 0.0
      %v357 = vadd.f32 %v355, %v356
      %v358 = vsel %vm335, %v352, 0.0
      %v359 = vadd.f32 %v357, %v358
      %v360 = vsel %vm335, %v354, 0.0
      %v361 = vadd.f32 %v359, %v360
      %v362 = vlog2.pop %v361
      %v363 = vmul.f32 %v362, 0.6931472
      %v364 = vadd.f32 %v342, %v363
      %vm365 = vcmp.eq.s32.totalorder %v333, 0
      %vm366 = vcmp.eq.s32.totalorder %v333, 1
      %vm367 = vcmp.eq.s32.totalorder %v333, 2
      %vm368 = vcmp.eq.s32.totalorder %v333, 3
      %v369 = vsel %vm365, %v329, 0.0
      %v370 = vsel %vm366, %v330, 0.0
      %v371 = vsel %vm367, %v331, 0.0
      %v372 = vsel %vm368, %v332, 0.0
      %v373 = vsel %vm335, %v369, 0.0
      %v374 = vsel %vm335, %v370, 0.0
      %v375 = vadd.f32 %v373, %v374
      %v376 = vsel %vm335, %v371, 0.0
      %v377 = vadd.f32 %v375, %v376
      %v378 = vsel %vm335, %v372, 0.0
      %v379 = vadd.f32 %v377, %v378
      %v380 = vsub.f32 %v364, %v379
      %v381 = vmul.f32 %v380, %v334
      %v382 = vld [vmem:[#allocation2] sm:$0x3]
      %v383 = vadd.f32 %v382, %v381
      %384 = vst [vmem:[#allocation2] sm:$0x3] %v383
      // Predicated region
      $region37: #{cross_entropy_loss_weighted.1} parent=31 // pred_check
        %p385 = pneg %p324
      $region38: #{cross_entropy_loss_weighted.1} parent=31 // pred_check_branch
        %387 = sbr.rel (%p385) target = $region40
      $region39: #{cross_entropy_loss_weighted.1} parent=31 // pred_region
        %v388 = vld [vmem:[#allocation2] sm:$0x3]
        %v389 = vsel %vm335, %v388, 0.0
        %390 = vadd.xlane.f32.xlu0 %v389
        %v391 = vpop.xlane.xlu0 %390
        %v392 = vrot.slane %v391, 4
        %v393 = vadd.f32 %v391, %v392
        %v394 = vrot.slane %v393, 2
        %v395 = vadd.f32 %v393, %v394
        %v396 = vrot.slane %v395, 1
        %v397 = vadd.f32 %v395, %v396
        %s398 = vtos %v397
        %v399 = vstv %s398
        %vm400 = vcmask 0
        %401 = vst.msk [vmem:[%s323] sm:$0x1] %vm400, %v399
      $region40: #{cross_entropy_loss_weighted.1} parent=31 // pred_fallthru
        _
      %p402 = scmp.lt.s32.totalorder %s19, 1
      %s403 = scalar_select %p402, %s19, 1
      %p404 = scmp.lt.s32.totalorder %s20, 0
      %s405 = scalar_select %p404, %s20, 0
      %s406 = sadd.s32 %s405, %s403
      %s407 = scalar_lea.vmem %s3, %s406
      // Predicated region
      $region41: #{cross_entropy_loss_weighted.1} parent=31 // pred_check
        %p408 = pneg %p155
      $region42: #{cross_entropy_loss_weighted.1} parent=31 // pred_check_branch
        %410 = sbr.rel (%p408) target = $region44
      $region43: #{cross_entropy_loss_weighted.1} parent=31 // pred_region
        _
      $region44: #{cross_entropy_loss_weighted.1} parent=31 // pred_fallthru
        _
    $region32: #{cross_entropy_loss_weighted.1} parent=5 // pred_fallthru
      _
    %p411 = scmp.le.s32.totalorder 2, %s9
    // Predicated region
    $region45: #{cross_entropy_loss_weighted.1} parent=5 // pred_check
      %p412 = pneg %p411
    $region46: #{cross_entropy_loss_weighted.1} parent=5 // pred_check_branch
      %414 = sbr.rel (%p412) target = $region48
    $region47: #{cross_entropy_loss_weighted.1} parent=5 // pred_region
      %s415 = ssub.s32 %s9, 2
      // Predicated region
      $region49: #{cross_entropy_loss_weighted.1} parent=47 // pred_check
        %p416 = pneg %p161
      $region50: #{cross_entropy_loss_weighted.1} parent=47 // pred_check_branch
        %418 = sbr.rel (%p416) target = $region52
      $region51: #{cross_entropy_loss_weighted.1} parent=47 // pred_region
        %p419 = scmp.lt.s32.totalorder %s22, 1
        %s420 = scalar_select %p419, %s22, 1
        %p421 = scmp.lt.s32.totalorder %s23, 0
        %s422 = scalar_select %p421, %s23, 0
        %s423 = sadd.s32 %s422, %s420
        %s424 = scalar_lea.vmem %s3, %s423
      $region52: #{cross_entropy_loss_weighted.1} parent=47 // pred_fallthru
        _
    $region48: #{cross_entropy_loss_weighted.1} parent=5 // pred_fallthru
      _
  $region6: #{cross_entropy_loss_weighted.1} parent=0 // loop_footer
    %s13 = sadd.s32 1, %s9
  $region7: #{cross_entropy_loss_weighted.1} parent=0 // loop_footer_branch
    %8 = sbr.rel target = $region3
  $region8: #{cross_entropy_loss_weighted.1} parent=0 // loop_exit
    _

</llo_original>
